<compile_context>
chip_gen: v6e
topology: v6e:2x2x1
jax: 0.10.0
libtpu: 0.0.40
codegen_flags: <defaults>
</compile_context>

<pallas_src>
import math
from functools import partial

import jax
import jax.numpy as jnp
from jax.experimental import pallas as pl
from jax.experimental.pallas import tpu as pltpu

MODEL_CHANNELS = 32
IN_CHANNELS = 4
OUT_CHANNELS = 8
IMAGE_SIZE = 16
TIME_EMBED_DIM = MODEL_CHANNELS * 4
GN_EPS = 1e-5


# ================================ fused kernel ================================

def _unet_kernel(x_ref, temb_ref, wa_ref, wb_ref, wm_ref, pv_ref, o_ref,
                 *, layout, n_samp, roll_sign):
    f32, bf16 = jnp.float32, jnp.bfloat16
    offA, offB, offM, offP = layout['A'], layout['B'], layout['M'], layout['P']
    emb_rows = layout['emb_rows']

    # ---- packed-parameter accessors (static slices of resident VMEM refs) ----
    def wA(nm):
        o, r, k = offA[nm]
        return wa_ref[o:o + r, 0:k]

    def wB(nm):
        o, r, k = offB[nm]
        return wb_ref[o:o + r, 0:k]

    def wM(nm):
        o, r, k = offM[nm]
        return wm_ref[o:o + r, 0:k]

    def pv(nm):
        o, r, _ = offP[nm]
        return pv_ref[o:o + r, :]

    def mm(w, x, b=None):
        y = jnp.dot(w, x.astype(bf16), preferred_element_type=f32)
        return y if b is None else y + b

    def silu(x):
        return x * jax.nn.sigmoid(x)

    def jroll(x, shift, axis):
        """jnp.roll semantics regardless of pltpu.roll's shift convention."""
        n = x.shape[axis]
        s = (shift * roll_sign) % n
        if s == 0:
            return x
        return pltpu.roll(x, s, axis=axis)

    # ---- per-stage geometry (computed once, reused by every conv / GN) ----
    def make_stage(h, w):
        l = h * w
        nl = n_samp * l
        idx = jax.lax.broadcasted_iota(jnp.int32, (1, nl), 1)
        pix = idx % l
        return dict(H=h, W=w, L=l, NL=nl, row=pix // w, col=pix % w,
                    smasks=[(idx // l) == k for k in range(n_samp)])

    st16 = make_stage(IMAGE_SIZE, IMAGE_SIZE)
    st8 = make_stage(IMAGE_SIZE // 2, IMAGE_SIZE // 2)
    chan_even64 = (jax.lax.broadcasted_iota(jnp.int32, (64, 1), 0) % 2) == 0

    # ---- per-sample helpers (batch lives on the lane axis) ----
    def per_sample_bcast(st, cols):
        """cols: [C, n_samp] -> [C, NL], each sample's column over its lane block."""
        out = 0.0
        for k, mk in enumerate(st['smasks']):
            out = jnp.where(mk, cols[:, k:k + 1], out)
        return out

    def group_norm(x, gname, bname, st, pairs, act):
        """GroupNorm32 on [C, NL] with per-sample stats (centered form, f32)."""
        inv_l = 1.0 / st['L']

        def pair_avg(v):          # average adjacent-channel pairs (32 groups of 2)
            if not pairs:
                return v
            up = jroll(v, 1, 0)   # v[i-1]
            dn = jroll(v, -1, 0)  # v[i+1]
            return (v + jnp.where(chan_even64, dn, up)) * 0.5

        mean_f = 0.0
        for mk in st['smasks']:
            m = pair_avg(jnp.sum(jnp.where(mk, x, 0.0), axis=1, keepdims=True) * inv_l)
            mean_f = jnp.where(mk, m, mean_f)
        xc = x - mean_f
        xc2 = xc * xc
        var_f = 0.0
        for mk in st['smasks']:
            v = pair_avg(jnp.sum(jnp.where(mk, xc2, 0.0), axis=1, keepdims=True) * inv_l)
            var_f = jnp.where(mk, v, var_f)
        y = xc * jax.lax.rsqrt(var_f + GN_EPS)
        y = y * pv(gname) + pv(bname)
        return silu(y) if act else y

    def conv3x3(x, wmat, b, st):
        """3x3 conv (pad=1) on [Cin, NL]: 9 roll+mask taps K-folded into one matmul."""
        h, w_ = st['H'], st['W']
        row, col = st['row'], st['col']
        taps = []
        for ki in range(3):
            for kj in range(3):
                d = (ki - 1) * w_ + (kj - 1)
                xt = jroll(x, -d, 1)          # xt[p] = x[p + d] (cyclic; edges masked)
                m = None
                if ki == 0:
                    m = row >= 1
                elif ki == 2:
                    m = row <= h - 2
                if kj == 0:
                    m = (col >= 1) if m is None else (m & (col >= 1))
                elif kj == 2:
                    m = (col <= w_ - 2) if m is None else (m & (col <= w_ - 2))
                if m is not None:
                    xt = jnp.where(m, xt, 0.0)
                taps.append(xt)
        xk = jnp.concatenate(taps, axis=0)    # [9*Cin, NL]
        return mm(wmat, xk, b)

    def res_block(x, name, st, conv1_w, conv2_w, emb_cols, skip_w_name, cin, cout):
        h = group_norm(x, name + '_gn1_g', name + '_gn1_b', st, cin == 64, True)
        h = conv3x3(h, conv1_w, pv(name + '_conv1_b'), st)
        h = h + per_sample_bcast(st, emb_cols)
        h = group_norm(h, name + '_gn2_g', name + '_gn2_b', st, cout == 64, True)
        # TODO(synk): nn.Dropout(p=dropout) is identity in eval mode / with dropout=0.
        h = conv3x3(h, conv2_w, pv(name + '_conv2_b'), st)
        if skip_w_name is not None:
            x = mm(wM(skip_w_name), x, pv(name + '_skip_b'))   # 1x1-conv skip
        return x + h

    # attention constants (built in-kernel from iota; no constant inputs needed)
    nt = st8['NL']
    r_i = jax.lax.broadcasted_iota(jnp.int32, (nt, nt), 0)
    c_i = jax.lax.broadcasted_iota(jnp.int32, (nt, nt), 1)
    attn_allow = (r_i // st8['L']) == (c_i // st8['L'])        # per-sample blocks
    eye_nt = jnp.where(r_i == c_i, 1.0, 0.0).astype(bf16)      # transpose helper

    def attention(x, name):
        c = x.shape[0]
        h = group_norm(x, name + '_gn_g', name + '_gn_b', st8, True, False)
        qkv = mm(wM(name + '_qkv'), h, pv(name + '_qkv_b'))    # [3C, NT]
        scale = 1.0 / math.sqrt(math.sqrt(c))
        q = qkv[0:c, :] * scale
        k = qkv[c:2 * c, :] * scale
        v = qkv[2 * c:3 * c, :]
        # q^T via a cheap bf16 identity NT-matmul (robust lowering path).
        qt = jax.lax.dot_general(eye_nt, q.astype(bf16), (((1,), (1,)), ((), ())),
                                 preferred_element_type=f32)   # [NT, C]
        s = jnp.dot(qt.astype(bf16), k.astype(bf16), preferred_element_type=f32)
        s = jnp.where(attn_allow, s, -1e30)
        s = s - jnp.max(s, axis=1, keepdims=True)
        e = jnp.exp(s)
        p_attn = e * pl.reciprocal(jnp.sum(e, axis=1, keepdims=True), approx=True)
        a = jax.lax.dot_general(v.astype(bf16), p_attn.astype(bf16),
                                (((1,), (1,)), ((), ())),
                                preferred_element_type=f32)    # [C, NT]
        return x + mm(wM(name + '_proj'), a, pv(name + '_proj_b'))

    # ------------------------------ forward pass ------------------------------
    x = x_ref[...]                  # [8, N*256] f32 (4 real + 4 zero-padded channels)
    temb = temb_ref[...]            # [32, N]

    # time-embedding MLP + fused per-ResBlock emb projections (one stacked matmul)
    e1 = silu(mm(wM('te1'), temb, pv('te1_b')))                 # [128, N]
    emb_act = silu(mm(wM('te2'), e1, pv('te2_b')))              # [128, N]
    embp = mm(wM('emb_all'), emb_act, pv('emb_all_b'))          # [224, N]

    def emb_cols(name):
        o, r = emb_rows[name]
        return embp[o:o + r, :]

    # input_blocks
    h = conv3x3(x, wA('in_conv'), pv('in_conv_b'), st16)                      # [32, N*256]
    h = res_block(h, 'rb0', st16, wA('rb0_conv1'), wA('rb0_conv2'),
                  emb_cols('rb0'), None, 32, 32)
    # Downsample: stride-1 conv at 16x16, then one exact 0/1 stride-2 selection matmul
    hd = conv3x3(h, wA('down'), pv('down_b'), st16)                           # [32, N*256]
    qs = c_i16 = None  # (names below built fresh)
    p_i = jax.lax.broadcasted_iota(jnp.int32, (st16['NL'], st8['NL']), 0)
    q_i = jax.lax.broadcasted_iota(jnp.int32, (st16['NL'], st8['NL']), 1)
    qw = q_i % st8['L']
    src = (q_i // st8['L']) * st16['L'] + (2 * (qw // st8['W'])) * st16['W'] + 2 * (qw % st8['W'])
    dsel = jnp.where(p_i == src, 1.0, 0.0)                                    # [N*256, N*64]
    h = jnp.dot(hd, dsel, preferred_element_type=f32)                         # [32, N*64]

    h = res_block(h, 'rb1', st8, wA('rb1_conv1'), wB('rb1_conv2'),
                  emb_cols('rb1'), 'rb1_skip', 32, 64)
    h = attention(h, 'attn1')

    # middle_block
    h = res_block(h, 'mid1', st8, wB('mid1_conv1'), wB('mid1_conv2'),
                  emb_cols('mid1'), None, 64, 64)
    h = attention(h, 'mid_attn')
    h = res_block(h, 'mid2', st8, wB('mid2_conv1'), wB('mid2_conv2'),
                  emb_cols('mid2'), None, 64, 64)

    # out head (pool='adaptive'): GN -> SiLU -> global avg pool -> 1x1 conv -> flatten
    # TODO(synk): PyTorch zero_module() zero-inits this conv; synthetic weights used here.
    h = group_norm(h, 'out_gn_g', 'out_gn_b', st8, True, True)
    lane_n = jax.lax.broadcasted_iota(jnp.int32, (1, n_samp), 1)
    pooled = jnp.zeros((64, n_samp), f32)
    for k, mk in enumerate(st8['smasks']):
        pk = jnp.sum(jnp.where(mk, h, 0.0), axis=1, keepdims=True) * (1.0 / st8['L'])
        pooled = jnp.where(lane_n == k, pk, pooled)
    o_ref[...] = mm(wM('out_head'), pooled, pv('out_b'))                      # [8, N]


# ------------------------------- host wrapper --------------------------------

def timestep_embedding(timesteps, dim, max_period=10000):
    half = dim // 2
    freqs = jnp.exp(-math.log(max_period) * jnp.arange(half, dtype=jnp.float32) / half)
    args = timesteps.astype(jnp.float32)[:, None] * freqs[None, :]
    return jnp.concatenate([jnp.cos(args), jnp.sin(args)], axis=-1)


def encoder_unet_forward(layout, roll_sign, weights, x, timesteps):
    n = x.shape[0]
    hw = IMAGE_SIZE * IMAGE_SIZE
    temb = timestep_embedding(timesteps, MODEL_CHANNELS).T                    # [32, N]
    xcf = x.reshape(n, IN_CHANNELS, hw)
    xcf = jnp.concatenate([xcf, jnp.zeros((n, 8 - IN_CHANNELS, hw), x.dtype)], axis=1)
    xcf = jnp.transpose(xcf, (1, 0, 2)).reshape(8, n * hw)                    # [8, N*256]

    kernel = partial(_unet_kernel, layout=layout, n_samp=n, roll_sign=roll_sign)
    out = pl.pallas_call(
        kernel,
        out_shape=jax.ShapeDtypeStruct((OUT_CHANNELS, n), jnp.float32),
        compiler_params=pltpu.CompilerParams(vmem_limit_bytes=32 * 1024 * 1024),
    )(xcf, temb, weights['wconvA'], weights['wconvB'], weights['wmisc'], weights['pvec'])
    return out.T                                                              # [N, 8]


# --------------------------- parameter preparation ---------------------------

class _RowPack:
    """Row-stacks small matrices into one array; records (offset, rows, cols)."""

    def __init__(self, width, out_dtype, row_align):
        self.width, self.dtype, self.row_align = width, out_dtype, row_align
        self.chunks, self.off, self.rows = [], {}, 0

    def add(self, name, mat):
        mat = jnp.asarray(mat, jnp.float32)
        if mat.ndim == 1:
            mat = mat[:, None]
        r, k = mat.shape
        rp = -(-r // self.row_align) * self.row_align
        buf = jnp.zeros((rp, self.width), jnp.float32).at[:r, :k].set(mat)
        self.off[name] = (self.rows, r, k)
        self.chunks.append(buf)
        self.rows += rp

    def finalize(self):
        return jnp.concatenate(self.chunks, axis=0).astype(self.dtype)


def _pack3x3(w, cin_pad=None):
    """[Cout, Cin, 3, 3] -> [Cout, 9*Cin] (tap-major, input-channel-minor)."""
    w = jnp.asarray(w, jnp.float32)
    co, ci = w.shape[0], w.shape[1]
    if cin_pad is not None and cin_pad > ci:
        w = jnp.concatenate([w, jnp.zeros((co, cin_pad - ci, 3, 3), w.dtype)], axis=1)
        ci = cin_pad
    return jnp.transpose(w, (0, 2, 3, 1)).reshape(co, 9 * ci)


def prepare_inputs(params):
    packA = _RowPack(288, jnp.bfloat16, 16)   # conv weights, Cout=32 / rb1_conv1
    packB = _RowPack(576, jnp.bfloat16, 16)   # conv weights, Cout=64, Cin=64
    packM = _RowPack(128, jnp.bfloat16, 16)   # linear / 1x1-conv weights
    packP = _RowPack(1, jnp.float32, 8)       # biases + GroupNorm gammas/betas

    packA.add('in_conv', _pack3x3(params['in_w'], cin_pad=8))
    packA.add('rb0_conv1', _pack3x3(params['rb0']['conv1_w']))
    packA.add('rb0_conv2', _pack3x3(params['rb0']['conv2_w']))
    packA.add('down', _pack3x3(params['down_w']))
    packA.add('rb1_conv1', _pack3x3(params['rb1']['conv1_w']))

    packB.add('rb1_conv2', _pack3x3(params['rb1']['conv2_w']))
    for nm in ('mid1', 'mid2'):
        packB.add(nm + '_conv1', _pack3x3(params[nm]['conv1_w']))
        packB.add(nm + '_conv2', _pack3x3(params[nm]['conv2_w']))

    emb_w = jnp.concatenate([params['rb0']['emb_w'], params['rb1']['emb_w'],
                             params['mid1']['emb_w'], params['mid2']['emb_w']], axis=0)
    emb_b = jnp.concatenate([params['rb0']['emb_b'], params['rb1']['emb_b'],
                             params['mid1']['emb_b'], params['mid2']['emb_b']], axis=0)
    packM.add('te1', params['te1_w'])
    packM.add('te2', params['te2_w'])
    packM.add('emb_all', emb_w)
    packM.add('rb1_skip', params['rb1']['skip_w'])
    packM.add('attn1_qkv', params['attn1']['qkv_w'])
    packM.add('attn1_proj', params['attn1']['proj_w'])
    packM.add('mid_attn_qkv', params['mid_attn']['qkv_w'])
    packM.add('mid_attn_proj', params['mid_attn']['proj_w'])
    packM.add('out_head', params['out_w'])

    packP.add('te1_b', params['te1_b'])
    packP.add('te2_b', params['te2_b'])
    packP.add('emb_all_b', emb_b)
    packP.add('in_conv_b', params['in_b'])
    packP.add('down_b', params['down_b'])
    for nm in ('rb0', 'rb1', 'mid1', 'mid2'):
        p = params[nm]
        packP.add(nm + '_gn1_g', p['gn1_g'])
        packP.add(nm + '_gn1_b', p['gn1_b'])
        packP.add(nm + '_conv1_b', p['conv1_b'])
        packP.add(nm + '_gn2_g', p['gn2_g'])
        packP.add(nm + '_gn2_b', p['gn2_b'])
        packP.add(nm + '_conv2_b', p['conv2_b'])
        if 'skip_b' in p:
            packP.add(nm + '_skip_b', p['skip_b'])
    for nm in ('attn1', 'mid_attn'):
        p = params[nm]
        packP.add(nm + '_gn_g', p['gn_g'])
        packP.add(nm + '_gn_b', p['gn_b'])
        packP.add(nm + '_qkv_b', p['qkv_b'])
        packP.add(nm + '_proj_b', p['proj_b'])
    packP.add('out_gn_g', params['out_gn_g'])
    packP.add('out_gn_b', params['out_gn_b'])
    packP.add('out_b', params['out_b'])

    weights = dict(wconvA=packA.finalize(), wconvB=packB.finalize(),
                   wmisc=packM.finalize(), pvec=packP.finalize())
    layout = dict(A=packA.off, B=packB.off, M=packM.off, P=packP.off,
                  emb_rows=dict(rb0=(0, 32), rb1=(32, 64), mid1=(96, 64), mid2=(160, 64)))
    return weights, layout


# ------------------------------ parameter init -------------------------------

def init_params(key):
    cnt = [0]

    def rnd(*shape, scale=0.05):
        k = jax.random.fold_in(key, cnt[0]); cnt[0] += 1
        return jax.random.normal(k, shape, dtype=jnp.float32) * scale

    def gn_pair(c):
        return jnp.ones((c,), jnp.float32) + rnd(c, scale=0.02), rnd(c, scale=0.02)

    def resblock(cin, cout):
        p = {}
        p['gn1_g'], p['gn1_b'] = gn_pair(cin)
        p['conv1_w'] = rnd(cout, cin, 3, 3); p['conv1_b'] = rnd(cout)
        p['emb_w'] = rnd(cout, TIME_EMBED_DIM); p['emb_b'] = rnd(cout)
        p['gn2_g'], p['gn2_b'] = gn_pair(cout)
        # TODO(synk): PyTorch zero_module() zero-inits this conv; synthetic random init.
        p['conv2_w'] = rnd(cout, cout, 3, 3); p['conv2_b'] = rnd(cout)
        if cin != cout:
            p['skip_w'] = rnd(cout, cin); p['skip_b'] = rnd(cout)
        return p

    def attn(c):
        p = {}
        p['gn_g'], p['gn_b'] = gn_pair(c)
        p['qkv_w'] = rnd(3 * c, c); p['qkv_b'] = rnd(3 * c)
        # TODO(synk): zero_module() on proj_out in the reference model.
        p['proj_w'] = rnd(c, c); p['proj_b'] = rnd(c)
        return p

    params = dict(
        te1_w=rnd(TIME_EMBED_DIM, MODEL_CHANNELS), te1_b=rnd(TIME_EMBED_DIM),
        te2_w=rnd(TIME_EMBED_DIM, TIME_EMBED_DIM), te2_b=rnd(TIME_EMBED_DIM),
        in_w=rnd(32, IN_CHANNELS, 3, 3), in_b=rnd(32),
        rb0=resblock(32, 32),
        down_w=rnd(32, 32, 3, 3), down_b=rnd(32),
        rb1=resblock(32, 64),
        attn1=attn(64),
        mid1=resblock(64, 64),
        mid_attn=attn(64),
        mid2=resblock(64, 64),
    )
    params['out_gn_g'], params['out_gn_b'] = gn_pair(64)
    params['out_w'] = rnd(OUT_CHANNELS, 64)
    params['out_b'] = rnd(OUT_CHANNELS)
    return params


# ---------------------------- pure-JAX reference -----------------------------

def _silu_h(x):
    return x * jax.nn.sigmoid(x)


def _gn_ref(x, g, b):
    n, c = x.shape[0], x.shape[1]
    xg = x.reshape(n, 32, c // 32, -1)
    m = xg.mean(axis=(2, 3), keepdims=True)
    v = jnp.mean((xg - m) ** 2, axis=(2, 3), keepdims=True)
    xn = ((xg - m) * jax.lax.rsqrt(v + GN_EPS)).reshape(x.shape)
    shape = (1, c) + (1,) * (x.ndim - 2)
    return xn * g.reshape(shape) + b.reshape(shape)


def _conv_ref(x, w, b, stride=1):
    y = jax.lax.conv_general_dilated(x, w, (stride, stride), ((1, 1), (1, 1)),
                                     dimension_numbers=('NCHW', 'OIHW', 'NCHW'))
    return y + b.reshape(1, -1, 1, 1)


def _resblock_ref(x, emb, p):
    h = _conv_ref(_silu_h(_gn_ref(x, p['gn1_g'], p['gn1_b'])), p['conv1_w'], p['conv1_b'])
    eo = _silu_h(emb) @ p['emb_w'].T + p['emb_b']
    h = h + eo[:, :, None, None]
    h = _conv_ref(_silu_h(_gn_ref(h, p['gn2_g'], p['gn2_b'])), p['conv2_w'], p['conv2_b'])
    if 'skip_w' in p:
        x = jnp.einsum('oc,nchw->nohw', p['skip_w'], x) + p['skip_b'].reshape(1, -1, 1, 1)
    return x + h


def _attn_ref(x, p):
    n, c, hh, ww = x.shape
    xf = x.reshape(n, c, hh * ww)
    h = _gn_ref(xf, p['gn_g'], p['gn_b'])
    qkv = jnp.einsum('oc,nct->not', p['qkv_w'], h) + p['qkv_b'].reshape(1, -1, 1)
    q, k, v = qkv[:, :c], qkv[:, c:2 * c], qkv[:, 2 * c:]
    scale = 1.0 / math.sqrt(math.sqrt(c))
    w = jnp.einsum('nct,ncs->nts', q * scale, k * scale)
    w = jax.nn.softmax(w, axis=-1)
    a = jnp.einsum('nts,ncs->nct', w, v)
    out = jnp.einsum('oc,nct->not', p['proj_w'], a) + p['proj_b'].reshape(1, -1, 1)
    return (xf + out).reshape(n, c, hh, ww)


def reference_forward(params, x, timesteps):
    temb = timestep_embedding(timesteps, MODEL_CHANNELS)
    e = _silu_h(temb @ params['te1_w'].T + params['te1_b'])
    emb = e @ params['te2_w'].T + params['te2_b']
    h = _conv_ref(x, params['in_w'], params['in_b'])
    h = _resblock_ref(h, emb, params['rb0'])
    h = _conv_ref(h, params['down_w'], params['down_b'], stride=2)
    h = _resblock_ref(h, emb, params['rb1'])
    h = _attn_ref(h, params['attn1'])
    h = _resblock_ref(h, emb, params['mid1'])
    h = _attn_ref(h, params['mid_attn'])
    h = _resblock_ref(h, emb, params['mid2'])
    h = _silu_h(_gn_ref(h, params['out_gn_g'], params['out_gn_b']))
    pooled = h.mean(axis=(2, 3))
    return pooled @ params['out_w'].T + params['out_b']


# ---------------------- pltpu.roll convention probe ---------------------------

def _detect_roll_sign():
    x = jnp.arange(64 * 256, dtype=jnp.float32).reshape(64, 256)

    def kernel(x_ref, a_ref, b_ref):
        a_ref[...] = pltpu.roll(x_ref[...], 1, axis=1)
        b_ref[...] = pltpu.roll(x_ref[...], 1, axis=0)

    a, b = pl.pallas_call(
        kernel,
        out_shape=(jax.ShapeDtypeStruct(x.shape, x.dtype),
                   jax.ShapeDtypeStruct(x.shape, x.dtype)),
    )(x)
    if bool(jnp.array_equal(a, jnp.roll(x, 1, axis=1))) and \
       bool(jnp.array_equal(b, jnp.roll(x, 1, axis=0))):
        return 1
    if bool(jnp.array_equal(a, jnp.roll(x, -1, axis=1))) and \
       bool(jnp.array_equal(b, jnp.roll(x, -1, axis=0))):
        return -1
    raise RuntimeError("Unexpected pltpu.roll semantics")


# ----------------------------------- main ------------------------------------

if __name__ == "__main__":
    key = jax.random.PRNGKey(0)
    params = init_params(jax.random.fold_in(key, 1234))
    weights, layout = prepare_inputs(params)
    roll_sign = _detect_roll_sign()

    x = jax.random.normal(jax.random.fold_in(key, 1),
                          (2, IN_CHANNELS, IMAGE_SIZE, IMAGE_SIZE), jnp.float32)
    timesteps = jnp.array([3.0, 17.0], jnp.float32)

    fwd = jax.jit(partial(encoder_unet_forward, layout, roll_sign))
    out = jax.block_until_ready(fwd(weights, x, timesteps))

    assert out.shape == (2, OUT_CHANNELS), out.shape
    assert bool(jnp.all(jnp.isfinite(out)))
    ref = reference_forward(params, x, timesteps)
    max_diff = float(jnp.max(jnp.abs(out - ref)))
    assert max_diff < 5e-2, f"kernel vs reference mismatch: max abs diff = {max_diff}"
    print("KERNEL_OK")
</pallas_src>

<mosaic_0001>
module attributes {stable_mosaic.version = 11 : i64} {
  func.func @kernel(%arg0: memref<64x256xf32, #tpu.memory_space<vmem>>, %arg1: memref<64x256xf32, #tpu.memory_space<vmem>>, %arg2: memref<64x256xf32, #tpu.memory_space<vmem>>) attributes {dimension_semantics = [], scalar_prefetch = 0 : i64, scratch_operands = 0 : i64, tpu.core_type = #tpu.core_type<tc>} {
    %c0 = arith.constant 0 : index
    %c0_0 = arith.constant 0 : index
    %0 = vector.load %arg0[%c0, %c0_0] : memref<64x256xf32, #tpu.memory_space<vmem>>, vector<64x256xf32>
    %c1_i32 = arith.constant 1 : i32
    %1 = tpu.dynamic_rotate %0 by %c1_i32 dim 1 : vector<64x256xf32>, i32 -> vector<64x256xf32>
    %c0_1 = arith.constant 0 : index
    %c0_2 = arith.constant 0 : index
    %2 = vector.load %arg1[%c0_1, %c0_2] : memref<64x256xf32, #tpu.memory_space<vmem>>, vector<64x256xf32>
    tpu.vector_store %arg1[%c0_1, %c0_2], %1 {strides = array<i32>} : memref<64x256xf32, #tpu.memory_space<vmem>>, vector<64x256xf32>,
    %c0_3 = arith.constant 0 : index
    %c0_4 = arith.constant 0 : index
    %3 = vector.load %arg0[%c0_3, %c0_4] : memref<64x256xf32, #tpu.memory_space<vmem>>, vector<64x256xf32>
    %c1_i32_5 = arith.constant 1 : i32
    %4 = tpu.dynamic_rotate %3 by %c1_i32_5 dim 0 : vector<64x256xf32>, i32 -> vector<64x256xf32>
    %c0_6 = arith.constant 0 : index
    %c0_7 = arith.constant 0 : index
    %5 = vector.load %arg2[%c0_6, %c0_7] : memref<64x256xf32, #tpu.memory_space<vmem>>, vector<64x256xf32>
    tpu.vector_store %arg2[%c0_6, %c0_7], %4 {strides = array<i32>} : memref<64x256xf32, #tpu.memory_space<vmem>>, vector<64x256xf32>,
    return
  }
}

</mosaic_0001>

<llo_original>
// kernel: tpu_custom_call.1
$region0: #{tpu_custom_call.1}
  #allocation0 [shape = 'u32[]', space=smem, size = 0x4, offset = 0x4, fixed_abs, tag = 'smem constant byte address 0x4 - core index']
  #allocation1 [shape = 'u32[144,128]{1,0:T(1,128)}', space=vmem, size = 0x12000, scoped, tag = 'internal scratch']
  %s0 = inlined_call_operand.hbm [shape: f32[64,256], index: 0, kind: input, shape index: {}]
  %s1 = inlined_call_operand.hbm [shape: f32[64,256], index: 1, kind: output, shape index: {0}]
  %s2 = inlined_call_operand.hbm [shape: f32[64,256], index: 2, kind: output, shape index: {1}]
  %3 = xla_tuple %s1, %s2
  %s4 = sld [smem:[#allocation0]]
  $region26: #{tpu_custom_call.1} parent=0
    _
  %s6 = ssub.s32 1, %s4
  %s7 = scalar_select 0, %s6, %s4
  $region1: #{tpu_custom_call.1} parent=0
    #allocation2 [shape = 'u8[65536]{0}', space=vmem, size = 0x10000, scoped, tag = 'input window, operand 0, single buffered']
    #allocation3 [shape = 's32[1]{0}', space=sflag, size = 0x4, scoped, tag = 'scoped memory for tpu_custom_call.1']
    #allocation4 [shape = 's32[1]{0}', space=sflag, size = 0x4, scoped, tag = 'scoped memory for tpu_custom_call.1']
    #allocation5 [shape = 'u8[65536]{0}', space=vmem, size = 0x10000, scoped, tag = 'output window, operand 0, single buffered']
    #allocation6 [shape = 'u8[65536]{0}', space=vmem, size = 0x10000, scoped, tag = 'output window, operand 1, single buffered']
    #allocation7 [shape = 's32[1]{0}', space=sflag, size = 0x4, scoped, tag = 'scoped memory for tpu_custom_call.1']
    %8 = vsyncpa [#allocation3], 0
    %9 = vsyncpa [#allocation4], 0
    %10 = vsyncpa [#allocation7], 0
    // Predicated region
    $region2: #{tpu_custom_call.1} parent=1 // pred_check
      _
    $region3: #{tpu_custom_call.1} parent=1 // pred_check_branch
      %12 = sbr.rel (0) target = $region5
    $region4: #{tpu_custom_call.1} parent=1 // pred_region
      %s14 = ssub.s32 2048, 2048
      %15 = vsyncadd [#allocation3], %s14
      %s16 = sshll.u32 [#allocation2], 4
      %s17 = int_to_ptr.vmem [resolvable:$true] %s16
      %22 = dma.hbm_to_vmem [thread:$0]  %s0, 2048, %s17, [#allocation3], 256, 256, 16
    $region5: #{tpu_custom_call.1} parent=1 // pred_fallthru
      _
    // Predicated region
    $region6: #{tpu_custom_call.1} parent=1 // pred_check
      _
    $region7: #{tpu_custom_call.1} parent=1 // pred_check_branch
      %24 = sbr.rel (0) target = $region9
    $region8: #{tpu_custom_call.1} parent=1 // pred_region
      %25 = dma.done [#allocation3], 2048
    $region9: #{tpu_custom_call.1} parent=1 // pred_fallthru
      _
    %v26 = vld [vmem:[#allocation2] sm:$0xff]
    %v27 = vld [vmem:[#allocation2 + $0x8] sm:$0xff]
    %v28 = vld [vmem:[#allocation2 + $0x10] sm:$0xff]
    %v29 = vld [vmem:[#allocation2 + $0x18] sm:$0xff]
    %v30 = vld [vmem:[#allocation2 + $0x20] sm:$0xff]
    %v31 = vld [vmem:[#allocation2 + $0x28] sm:$0xff]
    %v32 = vld [vmem:[#allocation2 + $0x30] sm:$0xff]
    %v33 = vld [vmem:[#allocation2 + $0x38] sm:$0xff]
    %v34 = vld [vmem:[#allocation2 + $0x40] sm:$0xff]
    %v35 = vld [vmem:[#allocation2 + $0x48] sm:$0xff]
    %v36 = vld [vmem:[#allocation2 + $0x50] sm:$0xff]
    %v37 = vld [vmem:[#allocation2 + $0x58] sm:$0xff]
    %v38 = vld [vmem:[#allocation2 + $0x60] sm:$0xff]
    %v39 = vld [vmem:[#allocation2 + $0x68] sm:$0xff]
    %v40 = vld [vmem:[#allocation2 + $0x70] sm:$0xff]
    %v41 = vld [vmem:[#allocation2 + $0x78] sm:$0xff]
    %42 = vrot.lane.b32.xlu0 %v26, 1
    %v43 = vpop.permute.xlu0 %42
    %44 = vrot.lane.b32.xlu0 %v28, 1
    %v45 = vpop.permute.xlu0 %44
    %46 = vrot.lane.b32.xlu0 %v30, 1
    %v47 = vpop.permute.xlu0 %46
    %48 = vrot.lane.b32.xlu0 %v32, 1
    %v49 = vpop.permute.xlu0 %48
    %50 = vrot.lane.b32.xlu0 %v34, 1
    %v51 = vpop.permute.xlu0 %50
    %52 = vrot.lane.b32.xlu0 %v36, 1
    %v53 = vpop.permute.xlu0 %52
    %54 = vrot.lane.b32.xlu0 %v38, 1
    %v55 = vpop.permute.xlu0 %54
    %56 = vrot.lane.b32.xlu0 %v40, 1
    %v57 = vpop.permute.xlu0 %56
    %58 = vrot.lane.b32.xlu0 %v27, 1
    %v59 = vpop.permute.xlu0 %58
    %60 = vrot.lane.b32.xlu0 %v29, 1
    %v61 = vpop.permute.xlu0 %60
    %62 = vrot.lane.b32.xlu0 %v31, 1
    %v63 = vpop.permute.xlu0 %62
    %64 = vrot.lane.b32.xlu0 %v33, 1
    %v65 = vpop.permute.xlu0 %64
    %66 = vrot.lane.b32.xlu0 %v35, 1
    %v67 = vpop.permute.xlu0 %66
    %68 = vrot.lane.b32.xlu0 %v37, 1
    %v69 = vpop.permute.xlu0 %68
    %70 = vrot.lane.b32.xlu0 %v39, 1
    %v71 = vpop.permute.xlu0 %70
    %72 = vrot.lane.b32.xlu0 %v41, 1
    %v73 = vpop.permute.xlu0 %72
    %v74 = vlaneseq
    %v75 = vand.u32 %v74, 127
    %vm76 = vcmp.lt.s32.totalorder %v75, 1
    %v77 = vsel %vm76, %v43, %v59
    %v78 = vsel %vm76, %v45, %v61
    %v79 = vsel %vm76, %v47, %v63
    %v80 = vsel %vm76, %v49, %v65
    %v81 = vsel %vm76, %v51, %v67
    %v82 = vsel %vm76, %v53, %v69
    %v83 = vsel %vm76, %v55, %v71
    %v84 = vsel %vm76, %v57, %v73
    %v85 = vsel %vm76, %v59, %v43
    %v86 = vsel %vm76, %v61, %v45
    %v87 = vsel %vm76, %v63, %v47
    %v88 = vsel %vm76, %v65, %v49
    %v89 = vsel %vm76, %v67, %v51
    %v90 = vsel %vm76, %v69, %v53
    %v91 = vsel %vm76, %v71, %v55
    %v92 = vsel %vm76, %v73, %v57
    %93 = vst [vmem:[#allocation5] sm:$0xff] %v85
    %94 = vst [vmem:[#allocation5 + $0x8] sm:$0xff] %v77
    %95 = vst [vmem:[#allocation5 + $0x10] sm:$0xff] %v86
    %96 = vst [vmem:[#allocation5 + $0x18] sm:$0xff] %v78
    %97 = vst [vmem:[#allocation5 + $0x20] sm:$0xff] %v87
    %98 = vst [vmem:[#allocation5 + $0x28] sm:$0xff] %v79
    %99 = vst [vmem:[#allocation5 + $0x30] sm:$0xff] %v88
    %100 = vst [vmem:[#allocation5 + $0x38] sm:$0xff] %v80
    %101 = vst [vmem:[#allocation5 + $0x40] sm:$0xff] %v89
    %102 = vst [vmem:[#allocation5 + $0x48] sm:$0xff] %v81
    %103 = vst [vmem:[#allocation5 + $0x50] sm:$0xff] %v90
    %104 = vst [vmem:[#allocation5 + $0x58] sm:$0xff] %v82
    %105 = vst [vmem:[#allocation5 + $0x60] sm:$0xff] %v91
    %106 = vst [vmem:[#allocation5 + $0x68] sm:$0xff] %v83
    %107 = vst [vmem:[#allocation5 + $0x70] sm:$0xff] %v92
    %108 = vst [vmem:[#allocation5 + $0x78] sm:$0xff] %v84
    %v109 = vld [vmem:[#allocation2] sm:$0xff]
    %v110 = vld [vmem:[#allocation2 + $0x8] sm:$0xff]
    %v111 = vld [vmem:[#allocation2 + $0x10] sm:$0xff]
    %v112 = vld [vmem:[#allocation2 + $0x18] sm:$0xff]
    %v113 = vld [vmem:[#allocation2 + $0x20] sm:$0xff]
    %v114 = vld [vmem:[#allocation2 + $0x28] sm:$0xff]
    %v115 = vld [vmem:[#allocation2 + $0x30] sm:$0xff]
    %v116 = vld [vmem:[#allocation2 + $0x38] sm:$0xff]
    %v117 = vld [vmem:[#allocation2 + $0x40] sm:$0xff]
    %v118 = vld [vmem:[#allocation2 + $0x48] sm:$0xff]
    %v119 = vld [vmem:[#allocation2 + $0x50] sm:$0xff]
    %v120 = vld [vmem:[#allocation2 + $0x58] sm:$0xff]
    %v121 = vld [vmem:[#allocation2 + $0x60] sm:$0xff]
    %v122 = vld [vmem:[#allocation2 + $0x68] sm:$0xff]
    %v123 = vld [vmem:[#allocation2 + $0x70] sm:$0xff]
    %v124 = vld [vmem:[#allocation2 + $0x78] sm:$0xff]
    %v125 = vrot.slane %v109, 7
    %v126 = vrot.slane %v110, 7
    %v127 = vrot.slane %v111, 7
    %v128 = vrot.slane %v112, 7
    %v129 = vrot.slane %v113, 7
    %v130 = vrot.slane %v114, 7
    %v131 = vrot.slane %v115, 7
    %v132 = vrot.slane %v116, 7
    %v133 = vrot.slane %v117, 7
    %v134 = vrot.slane %v118, 7
    %v135 = vrot.slane %v119, 7
    %v136 = vrot.slane %v120, 7
    %v137 = vrot.slane %v121, 7
    %v138 = vrot.slane %v122, 7
    %v139 = vrot.slane %v123, 7
    %v140 = vrot.slane %v124, 7
    %v141 = vlaneseq
    %v142 = vshrl.u32 %v141, 7
    %vm143 = vcmp.lt.s32.totalorder %v142, 1
    %v144 = vsel %vm143, %v137, %v139
    %v145 = vsel %vm143, %v138, %v140
    %v146 = vsel %vm143, %v135, %v137
    %v147 = vsel %vm143, %v136, %v138
    %v148 = vsel %vm143, %v133, %v135
    %v149 = vsel %vm143, %v134, %v136
    %v150 = vsel %vm143, %v131, %v133
    %v151 = vsel %vm143, %v132, %v134
    %v152 = vsel %vm143, %v129, %v131
    %v153 = vsel %vm143, %v130, %v132
    %v154 = vsel %vm143, %v127, %v129
    %v155 = vsel %vm143, %v128, %v130
    %v156 = vsel %vm143, %v125, %v127
    %v157 = vsel %vm143, %v126, %v128
    %v158 = vsel %vm143, %v139, %v125
    %v159 = vsel %vm143, %v140, %v126
    %160 = vst [vmem:[#allocation6] sm:$0xff] %v158
    %161 = vst [vmem:[#allocation6 + $0x8] sm:$0xff] %v159
    %162 = vst [vmem:[#allocation6 + $0x10] sm:$0xff] %v156
    %163 = vst [vmem:[#allocation6 + $0x18] sm:$0xff] %v157
    %164 = vst [vmem:[#allocation6 + $0x20] sm:$0xff] %v154
    %165 = vst [vmem:[#allocation6 + $0x28] sm:$0xff] %v155
    %166 = vst [vmem:[#allocation6 + $0x30] sm:$0xff] %v152
    %167 = vst [vmem:[#allocation6 + $0x38] sm:$0xff] %v153
    %168 = vst [vmem:[#allocation6 + $0x40] sm:$0xff] %v150
    %169 = vst [vmem:[#allocation6 + $0x48] sm:$0xff] %v151
    %170 = vst [vmem:[#allocation6 + $0x50] sm:$0xff] %v148
    %171 = vst [vmem:[#allocation6 + $0x58] sm:$0xff] %v149
    %172 = vst [vmem:[#allocation6 + $0x60] sm:$0xff] %v146
    %173 = vst [vmem:[#allocation6 + $0x68] sm:$0xff] %v147
    %174 = vst [vmem:[#allocation6 + $0x70] sm:$0xff] %v144
    %175 = vst [vmem:[#allocation6 + $0x78] sm:$0xff] %v145
    // Predicated region
    $region10: #{tpu_custom_call.1} parent=1 // pred_check
      _
    $region11: #{tpu_custom_call.1} parent=1 // pred_check_branch
      %177 = sbr.rel (0) target = $region13
    $region12: #{tpu_custom_call.1} parent=1 // pred_region
      %s179 = ssub.s32 2048, 2048
      %180 = vsyncadd [#allocation4], %s179
      %s181 = sshll.u32 [#allocation5], 4
      %s182 = int_to_ptr.vmem [resolvable:$true] %s181
      %187 = dma.vmem_to_hbm [thread:$0]  %s182, 2048, %s1, [#allocation4], 256, 256, 16
    $region13: #{tpu_custom_call.1} parent=1 // pred_fallthru
      _
    // Predicated region
    $region14: #{tpu_custom_call.1} parent=1 // pred_check
      _
    $region15: #{tpu_custom_call.1} parent=1 // pred_check_branch
      %189 = sbr.rel (0) target = $region17
    $region16: #{tpu_custom_call.1} parent=1 // pred_region
      %s191 = ssub.s32 2048, 2048
      %192 = vsyncadd [#allocation7], %s191
      %s193 = sshll.u32 [#allocation6], 4
      %s194 = int_to_ptr.vmem [resolvable:$true] %s193
      %199 = dma.vmem_to_hbm [thread:$0]  %s194, 2048, %s2, [#allocation7], 256, 256, 16
    $region17: #{tpu_custom_call.1} parent=1 // pred_fallthru
      _
    // Predicated region
    $region18: #{tpu_custom_call.1} parent=1 // pred_check
      _
    $region19: #{tpu_custom_call.1} parent=1 // pred_check_branch
      %201 = sbr.rel (0) target = $region21
    $region20: #{tpu_custom_call.1} parent=1 // pred_region
      %202 = dma.done [#allocation4], 2048
    $region21: #{tpu_custom_call.1} parent=1 // pred_fallthru
      _
    // Predicated region
    $region22: #{tpu_custom_call.1} parent=1 // pred_check
      _
    $region23: #{tpu_custom_call.1} parent=1 // pred_check_branch
      %204 = sbr.rel (0) target = $region25
    $region24: #{tpu_custom_call.1} parent=1 // pred_region
      %205 = dma.done [#allocation7], 2048
    $region25: #{tpu_custom_call.1} parent=1 // pred_fallthru
      _
    %206 = vsyncpa [#allocation3], 1
    %207 = vsyncpa [#allocation4], 1
    %208 = vsyncpa [#allocation7], 1

</llo_original>
